<compile_context>
chip_gen: v6e
topology: v6e:2x2x1
jax: 0.10.0
libtpu: 0.0.40
codegen_flags: <defaults>
</compile_context>

<pallas_src>
import jax
import jax.numpy as jnp
from jax.experimental import pallas as pl
from jax.experimental.pallas import tpu as pltpu


def _make_atloss_kernel(n_rows):
    """Kernel closure over the static (unpadded) row count."""

    def kernel(pred_ref, labels_ref, mask_ref, out_ref):
        # pred_ref/labels_ref: (TM, C); mask_ref: (TM, 1); out_ref: (1, 8, 128)
        pred = pred_ref[...].astype(jnp.float32)
        labels = labels_ref[...]                      # native dtype; compare only
        mask = mask_ref[...].astype(jnp.float32)

        tm, c = pred.shape

        # Row validity for the tail block (inputs are NOT padded in the wrapper).
        row0 = pl.program_id(0) * tm
        row_idx = row0 + jax.lax.broadcasted_iota(jnp.int32, (tm, 1), 0)
        valid = row_idx < n_rows                       # (TM, 1) bool

        col0 = jax.lax.broadcasted_iota(jnp.int32, (tm, c), 1) == 0
        # labels[:, 0] is forced to 0 in the reference; fold that into `pos`.
        pos = (labels > 0) & (~col0)                   # positive-class columns

        # Shared-exp logsumexp: keep-set 1 = col0 | pos, keep-set 2 = ~pos.
        # Their union covers every column, so the global row max is valid for
        # both and a single exp per element suffices.
        m = jnp.max(pred, axis=-1, keepdims=True)
        e = jnp.exp(pred - m)
        sum1 = jnp.sum(jnp.where(col0 | pos, e, 0.0), axis=-1, keepdims=True)
        sum2 = jnp.sum(jnp.where(pos, 0.0, e), axis=-1, keepdims=True)
        lse1 = m + jnp.log(sum1)                       # col0 always kept -> sum>0
        lse2 = m + jnp.log(sum2)

        # loss1 = -(log_softmax(logit1) * labels).sum ; labels multi-hot {0,1}
        n_pos = jnp.sum(pos.astype(jnp.float32), axis=-1, keepdims=True)
        pos_pred = jnp.sum(jnp.where(pos, pred, 0.0), axis=-1, keepdims=True)
        loss1 = lse1 * n_pos - pos_pred
        # loss2 = -(log_softmax(logit2) * th_label).sum ; th_label one-hot col0
        loss2 = lse2 - pred[:, 0:1]

        per_row = loss1 + loss2                        # (TM, 1)
        mask_v = jnp.where(valid, mask, 0.0)
        weighted = jnp.where(valid, per_row * mask_v, 0.0)   # where, not *0

        loss_partial = jnp.sum(weighted)
        mask_partial = jnp.sum(mask_v)

        # Lane-dense (1, 8, 128) partials tile: lane 0 = loss sum, lane 1 = mask sum.
        lane = jax.lax.broadcasted_iota(jnp.int32, out_ref.shape, 2)
        out_ref[...] = jnp.where(lane == 0, loss_partial,
                                 jnp.where(lane == 1, mask_partial, 0.0))

    return kernel


def atloss_forward(pred, relations, relation_mask, *, tile_rows=1024):
    """Returns (pred, scalar loss), matching ATLoss.forward semantics.

    NOTE: equals the PyTorch prefix-slice-and-concat formulation for
    prefix-style masks.  Labels are assumed multi-hot {0,1} (as in the module)
    and may be passed as float/int8/bool -- only a >0 compare is performed.
    """
    B, R, C = pred.shape
    N = B * R

    def _round_up(x, m):
        return ((x + m - 1) // m) * m

    # Tile sizing: multiple of 8, no larger than the row count, and keep
    # >= ~4 grid blocks for large N so v7x's two TensorCores both get work.
    tile_rows = max(8, _round_up(min(int(tile_rows), N), 8))
    tile_rows = min(tile_rows, max(8, _round_up(pl.cdiv(N, 4), 8)))
    num_blocks = pl.cdiv(N, tile_rows)

    # Native dtypes pass through; the kernel casts pred/mask to f32 internally.
    pred_flat = pred.reshape(N, C)
    labels_flat = relations.reshape(N, C)
    mask_flat = relation_mask.reshape(N, 1)

    in_bytes = (pred_flat.size * pred_flat.dtype.itemsize
                + labels_flat.size * labels_flat.dtype.itemsize
                + mask_flat.size * mask_flat.dtype.itemsize)
    cost = pl.CostEstimate(
        flops=12 * N * C,
        transcendentals=N * C + 2 * N,          # exp per element + 2 logs per row
        bytes_accessed=in_bytes + num_blocks * 8 * 128 * 4)

    partials = pl.pallas_call(
        _make_atloss_kernel(N),
        out_shape=jax.ShapeDtypeStruct((num_blocks, 8, 128), jnp.float32),
        grid_spec=pltpu.PrefetchScalarGridSpec(
            num_scalar_prefetch=0,
            grid=(num_blocks,),
            in_specs=[
                pl.BlockSpec((tile_rows, C), lambda i: (i, 0)),
                pl.BlockSpec((tile_rows, C), lambda i: (i, 0)),
                pl.BlockSpec((tile_rows, 1), lambda i: (i, 0)),
            ],
            out_specs=pl.BlockSpec((1, 8, 128), lambda i: (i, 0, 0)),
        ),
        compiler_params=pltpu.CompilerParams(
            dimension_semantics=("parallel",),
            vmem_limit_bytes=32 * 1024 * 1024),
        cost_estimate=cost,
    )(pred_flat, labels_flat, mask_flat)

    loss_sum = jnp.sum(partials[:, 0, 0])
    n_valid = jnp.sum(partials[:, 0, 1])
    loss = loss_sum / jnp.maximum(n_valid, 1.0)
    return pred, loss


def _reference(pred, relations, relation_mask):
    """Pure-JAX reference of the PyTorch forward (prefix-mask formulation)."""
    B, R, C = pred.shape
    pred_f = pred.reshape(B * R, C).astype(jnp.float32)
    labels = relations.reshape(B * R, C).astype(jnp.float32)
    mask = relation_mask.reshape(B * R).astype(jnp.float32)

    th_label = jnp.zeros_like(labels).at[:, 0].set(1.0)
    labels = labels.at[:, 0].set(0.0)
    p_mask = labels + th_label
    n_mask = 1.0 - labels
    logit1 = pred_f - (1.0 - p_mask) * 1e30
    logit2 = pred_f - (1.0 - n_mask) * 1e30
    loss1 = -jnp.sum(jax.nn.log_softmax(logit1, axis=-1) * labels, axis=-1)
    loss2 = -jnp.sum(jax.nn.log_softmax(logit2, axis=-1) * th_label, axis=-1)
    per_row = loss1 + loss2
    return jnp.sum(per_row * mask) / jnp.sum(mask)


if __name__ == "__main__":
    key = jax.random.PRNGKey(0)
    B, R, C = 2, 8, 32  # batch, max relation-pair slots, num relation classes

    k_pred, k_lab = jax.random.split(key)
    pred = jax.random.normal(k_pred, (B, R, C), dtype=jnp.float32)
    # multi-hot relation labels in {0,1}
    relations = (jax.random.uniform(k_lab, (B, R, C)) < 0.15).astype(jnp.float32)
    # prefix masks (valid relation counts per batch element)
    have_num = jnp.array([8, 5], dtype=jnp.int32)
    relation_mask = (jnp.arange(R)[None, :] < have_num[:, None]).astype(jnp.float32)

    out_pred, loss = atloss_forward(pred, relations, relation_mask)
    jax.block_until_ready(loss)

    ref_loss = _reference(pred, relations, relation_mask)
    assert jnp.allclose(loss, ref_loss, rtol=1e-5, atol=1e-5), (loss, ref_loss)
    assert out_pred.shape == pred.shape

    # Also exercise the narrow-dtype label path (int8) and a non-multiple-of-8
    # row count handled without wrapper padding.
    _, loss_i8 = atloss_forward(pred, relations.astype(jnp.int8), relation_mask,
                                tile_rows=8)
    jax.block_until_ready(loss_i8)
    assert jnp.allclose(loss_i8, ref_loss, rtol=1e-5, atol=1e-5), (loss_i8, ref_loss)

    # TODO(synk): get_label / push_result / get_result are eval-time metric &
    # file-I/O bookkeeping, not part of the forward pass; not translated.

    print("KERNEL_OK")
</pallas_src>

<mosaic_0001>
module attributes {stable_mosaic.version = 11 : i64} {
  func.func @kernel(%arg0: i32, %arg1: memref<8x32xf32, #tpu.memory_space<vmem>>, %arg2: memref<8x32xf32, #tpu.memory_space<vmem>>, %arg3: memref<8x1xf32, #tpu.memory_space<vmem>>, %arg4: memref<1x8x128xf32, #tpu.memory_space<vmem>>) attributes {dimension_semantics = [#tpu.dimension_semantics<parallel>], iteration_bounds = array<i64: 2>, scalar_prefetch = 0 : i64, scratch_operands = 0 : i64, tpu.core_type = #tpu.core_type<tc>, window_params = [{transform_indices = @transform_0, window_bounds = array<i64: 8, 32>}, {transform_indices = @transform_1, window_bounds = array<i64: 8, 32>}, {transform_indices = @transform_2, window_bounds = array<i64: 8, 1>}, {transform_indices = @transform_3, window_bounds = array<i64: 1, 8, 128>}]} {
    %c0 = arith.constant 0 : index
    %c0_0 = arith.constant 0 : index
    %0 = vector.load %arg1[%c0, %c0_0] : memref<8x32xf32, #tpu.memory_space<vmem>>, vector<8x32xf32>
    %c0_1 = arith.constant 0 : index
    %c0_2 = arith.constant 0 : index
    %1 = vector.load %arg2[%c0_1, %c0_2] : memref<8x32xf32, #tpu.memory_space<vmem>>, vector<8x32xf32>
    %c0_3 = arith.constant 0 : index
    %c0_4 = arith.constant 0 : index
    %2 = vector.load %arg3[%c0_3, %c0_4] : memref<8x1xf32, #tpu.memory_space<vmem>>, vector<8x1xf32>
    %c8_i32 = arith.constant 8 : i32
    %3 = arith.muli %arg0, %c8_i32 : i32
    %4 = tpu.iota {dimensions = array<i32: 0>} : vector<8x1xi32>
    %5 = vector.broadcast %3 : i32 to vector<8x1xi32>
    %6 = arith.addi %5, %4 : vector<8x1xi32>
    %c16_i32 = arith.constant 16 : i32
    %7 = vector.broadcast %c16_i32 : i32 to vector<8x1xi32>
    %8 = arith.cmpi slt, %6, %7 : vector<8x1xi32>
    %9 = tpu.iota {dimensions = array<i32: 1>} : vector<8x32xi32>
    %c0_i32 = arith.constant 0 : i32
    %10 = vector.broadcast %c0_i32 : i32 to vector<8x32xi32>
    %11 = arith.cmpi eq, %9, %10 : vector<8x32xi32>
    %cst = arith.constant 0.000000e+00 : f32
    %12 = vector.broadcast %cst : f32 to vector<8x32xf32>
    %13 = arith.cmpf ogt, %1, %12 : vector<8x32xf32>
    %cst_5 = arith.constant dense<true> : vector<8x32xi1>
    %14 = arith.xori %11, %cst_5 : vector<8x32xi1>
    %15 = arith.andi %13, %14 : vector<8x32xi1>
    %cst_6 = arith.constant dense<0xFF800000> : vector<8xf32>
    %16 = vector.multi_reduction <maximumf>, %0, %cst_6 [1] : vector<8x32xf32> to vector<8xf32>
    %17 = vector.shape_cast %16 : vector<8xf32> to vector<8x1xf32>
    %18 = vector.broadcast %17 : vector<8x1xf32> to vector<8x32xf32>
    %19 = arith.subf %0, %18 : vector<8x32xf32>
    %20 = math.exp %19 : vector<8x32xf32>
    %21 = arith.ori %11, %15 : vector<8x32xi1>
    %cst_7 = arith.constant 0.000000e+00 : f32
    %22 = vector.broadcast %cst_7 : f32 to vector<8x32xf32>
    %23 = arith.select %21, %20, %22 : vector<8x32xi1>, vector<8x32xf32>
    %cst_8 = arith.constant dense<0.000000e+00> : vector<8xf32>
    %24 = vector.multi_reduction <add>, %23, %cst_8 [1] : vector<8x32xf32> to vector<8xf32>
    %25 = vector.shape_cast %24 : vector<8xf32> to vector<8x1xf32>
    %cst_9 = arith.constant 0.000000e+00 : f32
    %26 = vector.broadcast %cst_9 : f32 to vector<8x32xf32>
    %27 = arith.select %15, %26, %20 : vector<8x32xi1>, vector<8x32xf32>
    %cst_10 = arith.constant dense<0.000000e+00> : vector<8xf32>
    %28 = vector.multi_reduction <add>, %27, %cst_10 [1] : vector<8x32xf32> to vector<8xf32>
    %29 = vector.shape_cast %28 : vector<8xf32> to vector<8x1xf32>
    %30 = math.log %25 : vector<8x1xf32>
    %31 = arith.addf %17, %30 : vector<8x1xf32>
    %32 = math.log %29 : vector<8x1xf32>
    %33 = arith.addf %17, %32 : vector<8x1xf32>
    %34 = arith.extui %15 : vector<8x32xi1> to vector<8x32xi32>
    %35 = arith.sitofp %34 : vector<8x32xi32> to vector<8x32xf32>
    %cst_11 = arith.constant dense<0.000000e+00> : vector<8xf32>
    %36 = vector.multi_reduction <add>, %35, %cst_11 [1] : vector<8x32xf32> to vector<8xf32>
    %37 = vector.shape_cast %36 : vector<8xf32> to vector<8x1xf32>
    %cst_12 = arith.constant 0.000000e+00 : f32
    %38 = vector.broadcast %cst_12 : f32 to vector<8x32xf32>
    %39 = arith.select %15, %0, %38 : vector<8x32xi1>, vector<8x32xf32>
    %cst_13 = arith.constant dense<0.000000e+00> : vector<8xf32>
    %40 = vector.multi_reduction <add>, %39, %cst_13 [1] : vector<8x32xf32> to vector<8xf32>
    %41 = vector.shape_cast %40 : vector<8xf32> to vector<8x1xf32>
    %42 = arith.mulf %31, %37 : vector<8x1xf32>
    %43 = arith.subf %42, %41 : vector<8x1xf32>
    %44 = vector.extract_strided_slice %0 {offsets = [0, 0], sizes = [8, 1], strides = [1, 1]} : vector<8x32xf32> to vector<8x1xf32>
    %45 = arith.subf %33, %44 : vector<8x1xf32>
    %46 = arith.addf %43, %45 : vector<8x1xf32>
    %cst_14 = arith.constant 0.000000e+00 : f32
    %47 = vector.broadcast %cst_14 : f32 to vector<8x1xf32>
    %48 = arith.select %8, %2, %47 : vector<8x1xi1>, vector<8x1xf32>
    %49 = arith.mulf %46, %48 : vector<8x1xf32>
    %cst_15 = arith.constant 0.000000e+00 : f32
    %50 = vector.broadcast %cst_15 : f32 to vector<8x1xf32>
    %51 = arith.select %8, %49, %50 : vector<8x1xi1>, vector<8x1xf32>
    %52 = vector.shape_cast %51 : vector<8x1xf32> to vector<1x8x1xf32>
    %cst_16 = arith.constant dense<0.000000e+00> : vector<1xf32>
    %53 = vector.multi_reduction <add>, %52, %cst_16 [1, 2] : vector<1x8x1xf32> to vector<1xf32>
    %54 = vector.shape_cast %53 : vector<1xf32> to vector<1x1x1xf32>
    %55 = vector.extract %54[0, 0, 0] : f32 from vector<1x1x1xf32>
    %56 = vector.shape_cast %48 : vector<8x1xf32> to vector<1x8x1xf32>
    %cst_17 = arith.constant dense<0.000000e+00> : vector<1xf32>
    %57 = vector.multi_reduction <add>, %56, %cst_17 [1, 2] : vector<1x8x1xf32> to vector<1xf32>
    %58 = vector.shape_cast %57 : vector<1xf32> to vector<1x1x1xf32>
    %59 = vector.extract %58[0, 0, 0] : f32 from vector<1x1x1xf32>
    %60 = tpu.iota {dimensions = array<i32: 2>} : vector<1x8x128xi32>
    %c0_i32_18 = arith.constant 0 : i32
    %61 = vector.broadcast %c0_i32_18 : i32 to vector<1x8x128xi32>
    %62 = arith.cmpi eq, %60, %61 : vector<1x8x128xi32>
    %c1_i32 = arith.constant 1 : i32
    %63 = vector.broadcast %c1_i32 : i32 to vector<1x8x128xi32>
    %64 = arith.cmpi eq, %60, %63 : vector<1x8x128xi32>
    %cst_19 = arith.constant 0.000000e+00 : f32
    %65 = vector.broadcast %59 : f32 to vector<1x8x128xf32>
    %66 = vector.broadcast %cst_19 : f32 to vector<1x8x128xf32>
    %67 = arith.select %64, %65, %66 : vector<1x8x128xi1>, vector<1x8x128xf32>
    %68 = vector.broadcast %55 : f32 to vector<1x8x128xf32>
    %69 = arith.select %62, %68, %67 : vector<1x8x128xi1>, vector<1x8x128xf32>
    %c0_20 = arith.constant 0 : index
    %c0_21 = arith.constant 0 : index
    %c0_22 = arith.constant 0 : index
    %70 = vector.load %arg4[%c0_20, %c0_21, %c0_22] : memref<1x8x128xf32, #tpu.memory_space<vmem>>, vector<1x8x128xf32>
    tpu.vector_store %arg4[%c0_20, %c0_21, %c0_22], %69 {strides = array<i32>} : memref<1x8x128xf32, #tpu.memory_space<vmem>>, vector<1x8x128xf32>,
    return
  }
  func.func @transform_0(%arg0: i32) -> (i32, i32) {
    %c0_i32 = arith.constant 0 : i32
    %c0_i32_0 = arith.constant 0 : i32
    return %arg0, %c0_i32 : i32, i32
  }
  func.func @transform_1(%arg0: i32) -> (i32, i32) {
    %c0_i32 = arith.constant 0 : i32
    %c0_i32_0 = arith.constant 0 : i32
    return %arg0, %c0_i32 : i32, i32
  }
  func.func @transform_2(%arg0: i32) -> (i32, i32) {
    %c0_i32 = arith.constant 0 : i32
    %c0_i32_0 = arith.constant 0 : i32
    return %arg0, %c0_i32 : i32, i32
  }
  func.func @transform_3(%arg0: i32) -> (i32, i32, i32) {
    %c0_i32 = arith.constant 0 : i32
    %c0_i32_0 = arith.constant 0 : i32
    %c0_i32_1 = arith.constant 0 : i32
    return %arg0, %c0_i32, %c0_i32_0 : i32, i32, i32
  }
}

</mosaic_0001>

<llo_original>
// kernel: tpu_custom_call.1
$region0: #{tpu_custom_call.1}
  #allocation0 [shape = 'u32[]', space=smem, size = 0x4, offset = 0x4, fixed_abs, tag = 'smem constant byte address 0x4 - core index']
  #allocation1 [shape = 'u32[144,128]{1,0:T(1,128)}', space=vmem, size = 0x12000, scoped, tag = 'internal scratch']
  %s0 = inlined_call_operand.vmem [shape: f32[16,32], index: 0, kind: input, shape index: {}]
  %s1 = inlined_call_operand.hbm [shape: f32[16,32], index: 1, kind: input, shape index: {}]
  %s2 = inlined_call_operand.vmem [shape: f32[16,1], index: 2, kind: input, shape index: {}]
  %s3 = inlined_call_operand.hbm [shape: f32[2,8,128], index: 3, kind: output, shape index: {}]
  %s4 = sld [smem:[#allocation0]]
  $region49: #{tpu_custom_call.1} parent=0
    _
  %s6 = ssub.s32 1, %s4
  %s7 = scalar_select 0, %s6, %s4
  $region1: #{tpu_custom_call.1} parent=0
    #allocation2 [shape = 'u8[8192]{0}', space=vmem, size = 0x2000, scoped, tag = 'input window, operand 1']
    #allocation3 [shape = 's32[2]{0}', space=sflag, size = 0x8, scoped, tag = 'scoped memory for tpu_custom_call.1']
    #allocation4 [shape = 's32[2]{0}', space=sflag, size = 0x8, scoped, tag = 'scoped memory for tpu_custom_call.1']
    #allocation5 [shape = 'u8[8192]{0}', space=vmem, size = 0x2000, scoped, tag = 'output window, operand 0']
    %8 = vsyncpa [#allocation3], 0
    %s9 = scalar_lea.sflag [#allocation3], 1
    %10 = vsyncpa %s9, 0
    %11 = vsyncpa [#allocation4], 0
    %s12 = scalar_lea.sflag [#allocation4], 1
    %13 = vsyncpa %s12, 0
    loop: start=0, step=1, limit=4
    $region2: #{tpu_custom_call.1} parent=1 // loop_pre_header
      _
    $region3: #{tpu_custom_call.1} parent=1 // loop_header
      %s15 = sphi 0, %s19
      %p16 = scmp.ge.s32.totalorder %s15, 4
      %s25 = sphi 0, %s27
      %s28 = sphi 0, %s25
      %s29 = sphi 0, %s28
      %s45 = sphi 0, %s29
      %s51 = sphi 0, %s53
      %s54 = sphi 0, %s51
      %s55 = sphi 0, %s54
      %s71 = sphi 0, %s55
      %s77 = sphi 0, %s79
      %s80 = sphi 0, %s77
      %s81 = sphi 0, %s80
      %s97 = sphi 0, %s81
      %s103 = sphi 0, %s105
      %s106 = sphi 0, %s103
      %s107 = sphi 0, %s106
      %s123 = sphi 0, %s107
    $region4: #{tpu_custom_call.1} parent=1 // loop_header_branch
      %18 = sbr.rel (%p16) target = $region8
    $region5: #{tpu_custom_call.1} parent=1 // loop_body
      %s20 = ssub.s32 %s15, 1
      %s21 = ssub.s32 %s15, 2
      %s22 = sadd.s32 %s15, 1
      %s23 = ssub.s32 %s15, %s22
      %p24 = scmp.eq.s32.totalorder %s23, 0
      %s26 = sadd.s32 %s25, 1
      %s27 = scalar_select %p24, %s25, %s26
      %p30 = pneg %p24
      %p31 = scmp.eq.s32.totalorder %s15, 1
      %p32 = por %p30, %p31
      %p33 = scmp.ne.s32.totalorder %s25, %s28
      %p34 = scmp.eq.s32.totalorder %s15, 0
      %p35 = por %p33, %p34
      %p36 = scmp.ne.s32.totalorder %s25, %s28
      %p37 = scmp.eq.s32.totalorder %s20, 1
      %p38 = por %p36, %p37
      %p39 = scmp.ne.s32.totalorder %s28, %s29
      %p40 = scmp.eq.s32.totalorder %s20, 0
      %p41 = por %p39, %p40
      %p42 = scmp.ne.s32.totalorder %s28, %s29
      %p43 = scmp.eq.s32.totalorder %s21, 1
      %p44 = por %p42, %p43
      %p46 = scmp.ne.s32.totalorder %s29, %s45
      %p47 = scmp.eq.s32.totalorder %s21, 0
      %p48 = por %p46, %p47
      %s49 = ssub.s32 %s15, %s22
      %p50 = scmp.eq.s32.totalorder %s49, 0
      %s52 = sadd.s32 %s51, 1
      %s53 = scalar_select %p50, %s51, %s52
      %p56 = pneg %p50
      %p57 = scmp.eq.s32.totalorder %s15, 1
      %p58 = por %p56, %p57
      %p59 = scmp.ne.s32.totalorder %s51, %s54
      %p60 = scmp.eq.s32.totalorder %s15, 0
      %p61 = por %p59, %p60
      %p62 = scmp.ne.s32.totalorder %s51, %s54
      %p63 = scmp.eq.s32.totalorder %s20, 1
      %p64 = por %p62, %p63
      %p65 = scmp.ne.s32.totalorder %s54, %s55
      %p66 = scmp.eq.s32.totalorder %s20, 0
      %p67 = por %p65, %p66
      %p68 = scmp.ne.s32.totalorder %s54, %s55
      %p69 = scmp.eq.s32.totalorder %s21, 1
      %p70 = por %p68, %p69
      %p72 = scmp.ne.s32.totalorder %s55, %s71
      %p73 = scmp.eq.s32.totalorder %s21, 0
      %p74 = por %p72, %p73
      %s75 = ssub.s32 %s15, %s22
      %p76 = scmp.eq.s32.totalorder %s75, 0
      %s78 = sadd.s32 %s77, 1
      %s79 = scalar_select %p76, %s77, %s78
      %p82 = pneg %p76
      %p83 = scmp.eq.s32.totalorder %s15, 1
      %p84 = por %p82, %p83
      %p85 = scmp.ne.s32.totalorder %s77, %s80
      %p86 = scmp.eq.s32.totalorder %s15, 0
      %p87 = por %p85, %p86
      %p88 = scmp.ne.s32.totalorder %s77, %s80
      %p89 = scmp.eq.s32.totalorder %s20, 1
      %p90 = por %p88, %p89
      %p91 = scmp.ne.s32.totalorder %s80, %s81
      %p92 = scmp.eq.s32.totalorder %s20, 0
      %p93 = por %p91, %p92
      %p94 = scmp.ne.s32.totalorder %s80, %s81
      %p95 = scmp.eq.s32.totalorder %s21, 1
      %p96 = por %p94, %p95
      %p98 = scmp.ne.s32.totalorder %s81, %s97
      %p99 = scmp.eq.s32.totalorder %s21, 0
      %p100 = por %p98, %p99
      %s101 = ssub.s32 %s15, %s22
      %p102 = scmp.eq.s32.totalorder %s101, 0
      %s104 = sadd.s32 %s103, 1
      %s105 = scalar_select %p102, %s103, %s104
      %p108 = pneg %p102
      %p109 = scmp.eq.s32.totalorder %s15, 1
      %p110 = por %p108, %p109
      %p111 = scmp.ne.s32.totalorder %s103, %s106
      %p112 = scmp.eq.s32.totalorder %s15, 0
      %p113 = por %p111, %p112
      %p114 = scmp.ne.s32.totalorder %s103, %s106
      %p115 = scmp.eq.s32.totalorder %s20, 1
      %p116 = por %p114, %p115
      %p117 = scmp.ne.s32.totalorder %s106, %s107
      %p118 = scmp.eq.s32.totalorder %s20, 0
      %p119 = por %p117, %p118
      %p120 = scmp.ne.s32.totalorder %s106, %s107
      %p121 = scmp.eq.s32.totalorder %s21, 1
      %p122 = por %p120, %p121
      %p124 = scmp.ne.s32.totalorder %s107, %s123
      %p125 = scmp.eq.s32.totalorder %s21, 0
      %p126 = por %p124, %p125
      %p127 = scmp.le.s32.totalorder 1, %s15
      %p128 = scmp.lt.s32.totalorder %s15, 3
      %p129 = pnand %p127, %p128
      %p130 = pneg %p129
      // Predicated region
      $region9: #{tpu_custom_call.1} parent=5 // pred_check
        _
      $region10: #{tpu_custom_call.1} parent=5 // pred_check_branch
        %132 = sbr.rel (%p129) target = $region12
      $region11: #{tpu_custom_call.1} parent=5 // pred_region
        %s133 = ssub.s32 %s15, 1
      $region12: #{tpu_custom_call.1} parent=5 // pred_fallthru
        _
      %p134 = scmp.lt.s32.totalorder %s15, 2
      // Predicated region
      $region13: #{tpu_custom_call.1} parent=5 // pred_check
        %p135 = pneg %p134
      $region14: #{tpu_custom_call.1} parent=5 // pred_check_branch
        %137 = sbr.rel (%p135) target = $region16
      $region15: #{tpu_custom_call.1} parent=5 // pred_region
        // Predicated region
        $region17: #{tpu_custom_call.1} parent=15 // pred_check
          %p138 = pneg %p35
        $region18: #{tpu_custom_call.1} parent=15 // pred_check_branch
          %140 = sbr.rel (%p138) target = $region20
        $region19: #{tpu_custom_call.1} parent=15 // pred_region
          %p141 = scmp.lt.s32.totalorder %s15, 1
          %s142 = scalar_select %p141, %s15, 1
          %s143 = smul.addr %s142, 8
          %s144 = scalar_lea.vmem %s0, %s143
        $region20: #{tpu_custom_call.1} parent=15 // pred_fallthru
          _
        // Predicated region
        $region21: #{tpu_custom_call.1} parent=15 // pred_check
          %p145 = pneg %p61
        $region22: #{tpu_custom_call.1} parent=15 // pred_check_branch
          %147 = sbr.rel (%p145) target = $region24
        $region23: #{tpu_custom_call.1} parent=15 // pred_region
          %s148 = sand.u32 %s51, 1
          %s149 = scalar_lea.sflag [#allocation3], %s148
          %s150 = sand.u32 %s51, 1
          %s151 = smul.addr %s150, 8
          %s152 = scalar_lea.vmem [#allocation2], %s151
          %s154 = ssub.s32 128, 128
          %155 = vsyncadd %s149, %s154
          %s156 = smul.addr %s15, 128
          %s157 = scalar_lea.hbm %s1, %s156
          %s159 = sshll.u32 %s152, 4
          %s160 = int_to_ptr.vmem [resolvable:$true] %s159
          %162 = dma.hbm_to_vmem [thread:$0]  %s157, 128, %s160, %s149
        $region24: #{tpu_custom_call.1} parent=15 // pred_fallthru
          _
        // Predicated region
        $region25: #{tpu_custom_call.1} parent=15 // pred_check
          %p163 = pneg %p87
        $region26: #{tpu_custom_call.1} parent=15 // pred_check_branch
          %165 = sbr.rel (%p163) target = $region28
        $region27: #{tpu_custom_call.1} parent=15 // pred_region
          %p166 = scmp.lt.s32.totalorder %s15, 1
          %s167 = scalar_select %p166, %s15, 1
          %s168 = smul.addr %s167, 8
          %s169 = scalar_lea.vmem %s2, %s168
        $region28: #{tpu_custom_call.1} parent=15 // pred_fallthru
          _
      $region16: #{tpu_custom_call.1} parent=5 // pred_fallthru
        _
      %p170 = scmp.le.s32.totalorder 1, %s15
      %p171 = scmp.lt.s32.totalorder %s15, 3
      %p172 = pnand %p170, %p171
      %p173 = pneg %p172
      // Predicated region
      $region29: #{tpu_custom_call.1} parent=5 // pred_check
        _
      $region30: #{tpu_custom_call.1} parent=5 // pred_check_branch
        %175 = sbr.rel (%p172) target = $region32
      $region31: #{tpu_custom_call.1} parent=5 // pred_region
        %s176 = ssub.s32 %s15, 1
        %s177 = sand.u32 %s54, 1
        %s178 = scalar_lea.sflag [#allocation3], %s177
        %s179 = sand.u32 %s54, 1
        %s180 = smul.addr %s179, 8
        %s181 = scalar_lea.vmem [#allocation2], %s180
        // Predicated region
        $region33: #{tpu_custom_call.1} parent=31 // pred_check
          %p182 = pneg %p67
        $region34: #{tpu_custom_call.1} parent=31 // pred_check_branch
          %184 = sbr.rel (%p182) target = $region36
        $region35: #{tpu_custom_call.1} parent=31 // pred_region
          %185 = dma.done %s178, 128
        $region36: #{tpu_custom_call.1} parent=31 // pred_fallthru
          _
        %p186 = scmp.lt.s32.totalorder %s20, 1
        %s187 = scalar_select %p186, %s20, 1
        %s188 = smul.addr %s187, 8
        %s189 = scalar_lea.vmem %s0, %s188
        %p190 = pneg %p41
        %p191 = pneg %p38
        %s192 = sand.u32 %s54, 1
        %s193 = scalar_lea.sflag [#allocation3], %s192
        %s194 = sand.u32 %s54, 1
        %s195 = smul.addr %s194, 8
        %s196 = scalar_lea.vmem [#allocation2], %s195
        %p197 = pneg %p67
        %p198 = pneg %p64
        %p199 = scmp.lt.s32.totalorder %s20, 1
        %s200 = scalar_select %p199, %s20, 1
        %s201 = smul.addr %s200, 8
        %s202 = scalar_lea.vmem %s2, %s201
        %p203 = pneg %p93
        %p204 = pneg %p90
        %p205 = pneg %p119
        %p206 = pneg %p116
        %s207 = sand.u32 %s106, 1
        %s208 = scalar_lea.sflag [#allocation4], %s207
        %s209 = sand.u32 %s106, 1
        %s210 = smul.addr %s209, 8
        %s211 = scalar_lea.vmem [#allocation5], %s210
        %p212 = scmp.lt.s32.totalorder %s20, 1
        %s213 = scalar_select %p212, %s20, 1
        %s214 = smul.addr %s213, 8
        %s215 = scalar_lea.vmem %s0, %s214
        %p216 = scmp.lt.s32.totalorder %s20, 1
        %s217 = scalar_select %p216, %s20, 1
        %s218 = smul.addr %s217, 8
        %s219 = scalar_lea.vmem %s2, %s218
        %v220 = vld [vmem:[%s215] sm:$0xff]
        %v221 = vld [vmem:[%s181] sm:$0xff]
        %v222 = vld [vmem:[%s219] sm:$0xff]
        %s223 = smul.u32 %s20, 8
        %v224 = vlaneseq
        %v225 = vshrl.u32 %v224, 7
        %v226 = vstv %s223
        %v227 = vadd.s32 %v226, %v225
        %vm228 = vcmp.lt.s32.totalorder %v227, 16
        %v229 = vlaneseq
        %v230 = vand.u32 %v229, 127
        %vm231 = vcmp.eq.s32.totalorder %v230, 0
        %vm232 = vcmp.gt.f32.partialorder %v221, 0.0
        %vm233 = vmxor %vm231, 1
        %vm234 = vmand %vm232, %vm233
        %vm235 = vcmask 261120
        %v236 = vsel %vm235, %v220, -inf
        %237 = vmax.xlane.f32.xlu0 %v236
        %v238 = vpop.xlane.xlu0 %237
        %v239 = vsub.f32 %v220, %v238
        %v240 = vmul.f32 %v239, 1.442695
        %v241 = vpow.pop %v240
        %vm242 = vmor %vm231, %vm234
        %v243 = vsel %vm242, %v241, 0.0
        %v244 = vsel %vm235, %v243, 0.0
        %245 = vadd.xlane.f32.xlu0 %v244
        %v246 = vpop.xlane.xlu0 %245
        %v247 = vsel %vm234, 0.0, %v241
        %v248 = vsel %vm235, %v247, 0.0
        %249 = vadd.xlane.f32.xlu0 %v248
        %v250 = vpop.xlane.xlu0 %249
        %v251 = vlog2.pop %v246
        %v252 = vmul.f32 %v251, 0.6931472
        %v253 = vadd.f32 %v238, %v252
        %v254 = vlog2.pop %v250
        %v255 = vmul.f32 %v254, 0.6931472
        %v256 = vadd.f32 %v238, %v255
        %v257 = vsel %vm234, 1, 0
        %v258 = vcvt.s32.f32 %v257
        %v259 = vsel %vm235, %v258, 0.0
        %260 = vadd.xlane.f32.xlu0 %v259
        %v261 = vpop.xlane.xlu0 %260
        %v262 = vsel %vm234, %v220, 0.0
        %v263 = vsel %vm235, %v262, 0.0
        %264 = vadd.xlane.f32.xlu0 %v263
        %v265 = vpop.xlane.xlu0 %264
        %v266 = vmul.f32 %v253, %v261
        %v267 = vsub.f32 %v266, %v265
        %v268 = vsub.f32 %v256, %v220
        %v269 = vadd.f32 %v267, %v268
        %v270 = vsel %vm228, %v222, 0.0
        %v271 = vmul.f32 %v269, %v270
        %v272 = vsel %vm228, %v271, 0.0
        %vm273 = vcmask 7168
        %v274 = vsel %vm273, %v272, 0.0
        %275 = vadd.xlane.f32.xlu0 %v274
        %v276 = vpop.xlane.xlu0 %275
        %v277 = vrot.slane %v276, 4
        %v278 = vadd.f32 %v276, %v277
        %v279 = vrot.slane %v278, 2
        %v280 = vadd.f32 %v278, %v279
        %v281 = vrot.slane %v280, 1
        %v282 = vadd.f32 %v280, %v281
        %s283 = vtos %v282
        %v284 = vsel %vm273, %v270, 0.0
        %285 = vadd.xlane.f32.xlu0 %v284
        %v286 = vpop.xlane.xlu0 %285
        %v287 = vrot.slane %v286, 4
        %v288 = vadd.f32 %v286, %v287
        %v289 = vrot.slane %v288, 2
        %v290 = vadd.f32 %v288, %v289
        %v291 = vrot.slane %v290, 1
        %v292 = vadd.f32 %v290, %v291
        %s293 = vtos %v292
        %vm294 = vcmp.eq.s32.totalorder %v230, 1
        %v295 = vstv %s293
        %v296 = vsel %vm294, %v295, 0.0
        %v297 = vstv %s283
        %v298 = vsel %vm231, %v297, %v296
        %299 = vst [vmem:[%s211] sm:$0xff] %v298
        %s300 = sand.u32 %s106, 1
        %s301 = scalar_lea.sflag [#allocation4], %s300
        %s302 = sand.u32 %s106, 1
        %s303 = smul.addr %s302, 8
        %s304 = scalar_lea.vmem [#allocation5], %s303
        // Predicated region
        $region37: #{tpu_custom_call.1} parent=31 // pred_check
          %p305 = pneg %p116
        $region38: #{tpu_custom_call.1} parent=31 // pred_check_branch
          %307 = sbr.rel (%p305) target = $region40
        $region39: #{tpu_custom_call.1} parent=31 // pred_region
          %s309 = ssub.s32 128, 128
          %310 = vsyncadd %s301, %s309
          %s311 = smul.addr %s20, 128
          %s312 = scalar_lea.hbm %s3, %s311
          %s314 = sshll.u32 %s304, 4
          %s315 = int_to_ptr.vmem [resolvable:$true] %s314
          %317 = dma.vmem_to_hbm [thread:$0]  %s315, 128, %s312, %s301
        $region40: #{tpu_custom_call.1} parent=31 // pred_fallthru
          _
      $region32: #{tpu_custom_call.1} parent=5 // pred_fallthru
        _
      %p318 = scmp.le.s32.totalorder 2, %s15
      // Predicated region
      $region41: #{tpu_custom_call.1} parent=5 // pred_check
        %p319 = pneg %p318
      $region42: #{tpu_custom_call.1} parent=5 // pred_check_branch
        %321 = sbr.rel (%p319) target = $region44
      $region43: #{tpu_custom_call.1} parent=5 // pred_region
        %s322 = ssub.s32 %s15, 2
        // Predicated region
        $region45: #{tpu_custom_call.1} parent=43 // pred_check
          %p323 = pneg %p122
        $region46: #{tpu_custom_call.1} parent=43 // pred_check_branch
          %325 = sbr.rel (%p323) target = $region48
        $region47: #{tpu_custom_call.1} parent=43 // pred_region
          %s326 = sand.u32 %s107, 1
          %s327 = scalar_lea.sflag [#allocation4], %s326
          %s328 = sand.u32 %s107, 1
          %s329 = smul.addr %s328, 8
          %s330 = scalar_lea.vmem [#allocation5], %s329
          %331 = dma.done %s327, 128
        $region48: #{tpu_custom_call.1} parent=43 // pred_fallthru
          _
      $region44: #{tpu_custom_call.1} parent=5 // pred_fallthru
        _
    $region6: #{tpu_custom_call.1} parent=1 // loop_footer
      %s19 = sadd.s32 1, %s15
    $region7: #{tpu_custom_call.1} parent=1 // loop_footer_branch
      %14 = sbr.rel target = $region3
    $region8: #{tpu_custom_call.1} parent=1 // loop_exit
      _
    %332 = vsyncpa [#allocation3], 1
    %s333 = scalar_lea.sflag [#allocation3], 1
    %334 = vsyncpa %s333, 1
    %335 = vsyncpa [#allocation4], 1
    %s336 = scalar_lea.sflag [#allocation4], 1
    %337 = vsyncpa %s336, 1

</llo_original>
